<compile_context>
chip_gen: v7x
topology: tpu7x:2x2x1
jax: 0.10.0
libtpu: 0.0.40
codegen_flags: <defaults>
</compile_context>

<pallas_src>
import functools

import jax
import jax.numpy as jnp
from jax.experimental import pallas as pl
from jax.experimental.pallas import tpu as pltpu


def _infonce_kernel(yhat_ref, out_ref, acc_ref, *, neg_inv_t, bsz, tile_b,
                    tiles_per_split):
    s = pl.program_id(0)   # batch split (parallel / megacore axis)
    i = pl.program_id(1)   # tile within split (reduction axis, "arbitrary")

    @pl.when(i == 0)
    def _():
        acc_ref[...] = jnp.zeros_like(acc_ref)

    # (K, tile_b): K on sublanes, batch dense on lanes.
    z = yhat_ref[...].astype(jnp.float32) * jnp.float32(neg_inv_t)
    m = jnp.max(z, axis=0, keepdims=True)                            # (1, tile_b)
    lse = m + jnp.log(jnp.sum(jnp.exp(z - m), axis=0, keepdims=True))
    per_col = lse - z[0:1, :]                                        # (1, tile_b)

    # Mask ragged / padded columns (global column index >= bsz).
    col0 = (s * tiles_per_split + i) * tile_b
    col = col0 + jax.lax.broadcasted_iota(jnp.int32, (1, tile_b), 1)
    per_col = jnp.where(col < bsz, per_col, 0.0)

    acc_ref[...] += per_col                                          # VPU only

    @pl.when(i == pl.num_programs(1) - 1)
    def _():
        # Single cross-lane (XLU) reduce per split, deferred to the last tile.
        out_ref[0, 0] = jnp.sum(acc_ref[...])


def infonce_loss(y_hat, y, *, nneg, temperature=1.0, max_tile_b=2048):
    """Pallas-backed InfoNCE loss. y_hat, y: flat arrays of length (nneg+1)*bsz."""
    K = nneg + 1
    bsz = y.shape[0] // K

    # Natural (K, bsz) layout: element [k, b] = y_hat[k*bsz + b].  No transpose.
    yh = y_hat.reshape(K, bsz)

    # Tile the batch along the lane axis.
    if bsz <= max_tile_b:
        tile_b = bsz                       # single full-extent tile
    else:
        tile_b = max_tile_b                # multiple of 128
    total_tiles = pl.cdiv(bsz, tile_b)
    # 2-way batch split (second TensorCore on v7x) only when it divides evenly,
    # so every grid block index stays in range.
    num_splits = 2 if (total_tiles >= 2 and total_tiles % 2 == 0) else 1
    tiles_per_split = total_tiles // num_splits

    kernel = functools.partial(
        _infonce_kernel,
        neg_inv_t=float(-1.0 / temperature),
        bsz=bsz,
        tile_b=tile_b,
        tiles_per_split=tiles_per_split,
    )

    itemsize = jnp.dtype(y_hat.dtype).itemsize
    cost = pl.CostEstimate(
        flops=6 * bsz * K,
        transcendentals=bsz * (K + 1),           # exp per element + log per column
        bytes_accessed=bsz * K * itemsize + num_splits * 4,
    )

    partials = pl.pallas_call(
        kernel,
        out_shape=jax.ShapeDtypeStruct((num_splits, 1), jnp.float32),
        grid_spec=pltpu.PrefetchScalarGridSpec(
            num_scalar_prefetch=0,
            grid=(num_splits, tiles_per_split),
            in_specs=[
                pl.BlockSpec((K, tile_b),
                             lambda s, i: (0, s * tiles_per_split + i)),
            ],
            out_specs=pl.BlockSpec((1, 1), lambda s, i: (s, 0),
                                   memory_space=pltpu.MemorySpace.SMEM),
            scratch_shapes=[pltpu.VMEM((1, tile_b), jnp.float32)],
        ),
        compiler_params=pltpu.CompilerParams(
            dimension_semantics=("parallel", "arbitrary")),
        cost_estimate=cost,
    )(yh)

    return jnp.sum(partials) / jnp.float32(bsz)


def _reference_loss(y_hat, y, nneg, temperature):
    # pure-JAX reference mirroring the PyTorch forward
    bsz = y.shape[0] // (nneg + 1)
    yh = jnp.transpose(y_hat.reshape(nneg + 1, bsz))
    logp = jax.nn.log_softmax(-yh / temperature, axis=-1)
    return jnp.mean(-logp[:, 0])


if __name__ == "__main__":
    nneg = 7
    temperature = 0.5

    def run_case(bsz, max_tile_b):
        n = (nneg + 1) * bsz
        key = jax.random.PRNGKey(0)
        k1, k2 = jax.random.split(key)
        y_hat = jax.random.normal(k1, (n,), dtype=jnp.float32)
        y = jax.random.normal(k2, (n,), dtype=jnp.float32)  # only length is used
        out = infonce_loss(y_hat, y, nneg=nneg, temperature=temperature,
                           max_tile_b=max_tile_b)
        out = jax.block_until_ready(out)
        ref = jax.block_until_ready(_reference_loss(y_hat, y, nneg, temperature))
        assert jnp.allclose(out, ref, rtol=1e-5, atol=1e-5), (bsz, out, ref)

    run_case(8, 2048)     # single full-extent tile (small-shape path)
    run_case(300, 128)    # multi-tile grid + masked ragged last tile
    run_case(512, 128)    # even tile count -> 2-way ("parallel") batch split

    print("KERNEL_OK")
</pallas_src>

<mosaic_0001>
module attributes {stable_mosaic.version = 11 : i64} {
  func.func @_infonce_kernel(%arg0: i32, %arg1: i32, %arg2: memref<8x8xf32, #tpu.memory_space<vmem>>, %arg3: memref<1x1xf32, #tpu.memory_space<smem>>, %arg4: memref<1x8xf32, #tpu.memory_space<vmem>>) attributes {dimension_semantics = [#tpu.dimension_semantics<parallel>, #tpu.dimension_semantics<arbitrary>], iteration_bounds = array<i64: 1, 1>, scalar_prefetch = 0 : i64, scratch_operands = 1 : i64, tpu.core_type = #tpu.core_type<tc>, window_params = [{transform_indices = @transform_0, window_bounds = array<i64: 8, 8>}, {transform_indices = @transform_1, window_bounds = array<i64: 1, 1>}]} {
    %c0_i32 = arith.constant 0 : i32
    %0 = arith.cmpi eq, %arg1, %c0_i32 : i32
    %1 = arith.extui %0 : i1 to i32
    %c0_i32_0 = arith.constant 0 : i32
    %2 = arith.cmpi ne, %1, %c0_i32_0 : i32
    scf.if %2 {
      %cst_12 = arith.constant 0.000000e+00 : f32
      %33 = vector.broadcast %cst_12 : f32 to vector<1x8xf32>
      %c0_13 = arith.constant 0 : index
      %c0_14 = arith.constant 0 : index
      %34 = vector.load %arg4[%c0_13, %c0_14] : memref<1x8xf32, #tpu.memory_space<vmem>>, vector<1x8xf32>
      tpu.vector_store %arg4[%c0_13, %c0_14], %33 {strides = array<i32>} : memref<1x8xf32, #tpu.memory_space<vmem>>, vector<1x8xf32>,
    } else {
    }
    %c0 = arith.constant 0 : index
    %c0_1 = arith.constant 0 : index
    %3 = vector.load %arg2[%c0, %c0_1] : memref<8x8xf32, #tpu.memory_space<vmem>>, vector<8x8xf32>
    %cst = arith.constant -2.000000e+00 : f32
    %4 = vector.broadcast %cst : f32 to vector<8x8xf32>
    %5 = arith.mulf %3, %4 : vector<8x8xf32>
    %cst_2 = arith.constant dense<0xFF800000> : vector<8xf32>
    %6 = vector.multi_reduction <maximumf>, %5, %cst_2 [0] : vector<8x8xf32> to vector<8xf32>
    %7 = vector.shape_cast %6 : vector<8xf32> to vector<1x8xf32>
    %8 = vector.broadcast %7 : vector<1x8xf32> to vector<8x8xf32>
    %9 = arith.subf %5, %8 : vector<8x8xf32>
    %10 = math.exp %9 : vector<8x8xf32>
    %cst_3 = arith.constant dense<0.000000e+00> : vector<8xf32>
    %11 = vector.multi_reduction <add>, %10, %cst_3 [0] : vector<8x8xf32> to vector<8xf32>
    %12 = vector.shape_cast %11 : vector<8xf32> to vector<1x8xf32>
    %13 = math.log %12 : vector<1x8xf32>
    %14 = arith.addf %7, %13 : vector<1x8xf32>
    %15 = vector.extract_strided_slice %5 {offsets = [0, 0], sizes = [1, 8], strides = [1, 1]} : vector<8x8xf32> to vector<1x8xf32>
    %16 = arith.subf %14, %15 : vector<1x8xf32>
    %c1_i32 = arith.constant 1 : i32
    %17 = arith.muli %arg0, %c1_i32 : i32
    %18 = arith.addi %17, %arg1 : i32
    %c8_i32 = arith.constant 8 : i32
    %19 = arith.muli %18, %c8_i32 : i32
    %20 = tpu.iota {dimensions = array<i32: 1>} : vector<1x8xi32>
    %21 = vector.broadcast %19 : i32 to vector<1x8xi32>
    %22 = arith.addi %21, %20 : vector<1x8xi32>
    %c8_i32_4 = arith.constant 8 : i32
    %23 = vector.broadcast %c8_i32_4 : i32 to vector<1x8xi32>
    %24 = arith.cmpi slt, %22, %23 : vector<1x8xi32>
    %cst_5 = arith.constant 0.000000e+00 : f32
    %25 = vector.broadcast %cst_5 : f32 to vector<1x8xf32>
    %26 = arith.select %24, %16, %25 : vector<1x8xi1>, vector<1x8xf32>
    %c0_6 = arith.constant 0 : index
    %c0_7 = arith.constant 0 : index
    %27 = vector.load %arg4[%c0_6, %c0_7] : memref<1x8xf32, #tpu.memory_space<vmem>>, vector<1x8xf32>
    %28 = arith.addf %27, %26 : vector<1x8xf32>
    %c0_8 = arith.constant 0 : index
    %c0_9 = arith.constant 0 : index
    %29 = vector.load %arg4[%c0_8, %c0_9] : memref<1x8xf32, #tpu.memory_space<vmem>>, vector<1x8xf32>
    tpu.vector_store %arg4[%c0_8, %c0_9], %28 {strides = array<i32>} : memref<1x8xf32, #tpu.memory_space<vmem>>, vector<1x8xf32>,
    %c0_i32_10 = arith.constant 0 : i32
    %30 = arith.cmpi eq, %arg1, %c0_i32_10 : i32
    %31 = arith.extui %30 : i1 to i32
    %c0_i32_11 = arith.constant 0 : i32
    %32 = arith.cmpi ne, %31, %c0_i32_11 : i32
    scf.if %32 {
      %c0_12 = arith.constant 0 : index
      %c0_13 = arith.constant 0 : index
      %33 = vector.load %arg4[%c0_12, %c0_13] : memref<1x8xf32, #tpu.memory_space<vmem>>, vector<1x8xf32>
      %34 = vector.shape_cast %33 : vector<1x8xf32> to vector<1x1x8xf32>
      %cst_14 = arith.constant dense<0.000000e+00> : vector<1xf32>
      %35 = vector.multi_reduction <add>, %34, %cst_14 [1, 2] : vector<1x1x8xf32> to vector<1xf32>
      %36 = vector.shape_cast %35 : vector<1xf32> to vector<1x1x1xf32>
      %37 = vector.extract %36[0, 0, 0] : f32 from vector<1x1x1xf32>
      %c0_15 = arith.constant 0 : index
      %c0_16 = arith.constant 0 : index
      %38 = memref.load %arg3[%c0_15, %c0_16] : memref<1x1xf32, #tpu.memory_space<smem>>
      memref.store %37, %arg3[%c0_15, %c0_16] : memref<1x1xf32, #tpu.memory_space<smem>>
    } else {
    }
    return
  }
  func.func @transform_0(%arg0: i32, %arg1: i32) -> (i32, i32) {
    %c1_i32 = arith.constant 1 : i32
    %0 = arith.muli %arg0, %c1_i32 : i32
    %1 = arith.addi %0, %arg1 : i32
    %c0_i32 = arith.constant 0 : i32
    %c0_i32_0 = arith.constant 0 : i32
    return %c0_i32, %1 : i32, i32
  }
  func.func @transform_1(%arg0: i32, %arg1: i32) -> (i32, i32) {
    %c0_i32 = arith.constant 0 : i32
    %c0_i32_0 = arith.constant 0 : i32
    return %arg0, %c0_i32 : i32, i32
  }
}

</mosaic_0001>

<llo_original>
// kernel: tpu_custom_call.1
$region0: #{tpu_custom_call.1}
  #allocation0 [shape = 'u32[]', space=smem, size = 0x4, offset = 0x4, fixed_abs, tag = 'smem constant byte address 0x4 - core index']
  #allocation1 [shape = 'u32[144,128]{1,0:T(1,128)}', space=vmem, size = 0x12000, scoped, tag = 'internal scratch']
  #allocation2 [shape = 'f32[1,8]{1,0:T(1,128)}', space=vmem, size = 0x200, scoped, tag = 'scratch operand']
  %s0 = inlined_call_operand.hbm [shape: f32[8,8], index: 0, kind: input, shape index: {}]
  %s1 = inlined_call_operand.hbm [shape: f32[1,1], index: 1, kind: output, shape index: {}]
  %s2 = sld [smem:[#allocation0]]
  $region26: #{tpu_custom_call.1} parent=0
    _
  %s4 = ssub.s32 1, %s2
  %s5 = scalar_select 0, %s4, %s2
  $region1: #{tpu_custom_call.1} parent=0
    #allocation3 [shape = 'u8[4096]{0}', space=vmem, size = 0x1000, scoped, tag = 'input window, operand 0, single buffered']
    #allocation4 [shape = 's32[1]{0}', space=sflag, size = 0x4, scoped, tag = 'scoped memory for tpu_custom_call.1']
    #allocation5 [shape = 's32[1]{0}', space=sflag, size = 0x4, scoped, tag = 'scoped memory for tpu_custom_call.1']
    #allocation6 [shape = 'u8[512]{0}', space=smem, size = 0x200, scoped, tag = 'output window, operand 0, single buffered']
    %6 = vsyncpa [#allocation4], 0
    %7 = vsyncpa [#allocation5], 0
    // Predicated region
    $region2: #{tpu_custom_call.1} parent=1 // pred_check
      _
    $region3: #{tpu_custom_call.1} parent=1 // pred_check_branch
      %9 = sbr.rel (0) target = $region5
    $region4: #{tpu_custom_call.1} parent=1 // pred_region
      %s10 = sadd.s32 0, 0
      %s12 = ssub.s32 128, 128
      %13 = vsyncadd [#allocation4], %s12
      %s14 = smul.addr %s10, 128
      %s15 = scalar_lea.hbm %s0, %s14
      %s17 = sshll.u32 [#allocation3], 4
      %s18 = int_to_ptr.vmem [resolvable:$true] %s17
      %20 = dma.hbm_to_vmem [thread:$0]  %s15, 128, %s18, [#allocation4]
    $region5: #{tpu_custom_call.1} parent=1 // pred_fallthru
      _
    // Predicated region
    $region6: #{tpu_custom_call.1} parent=1 // pred_check
      _
    $region7: #{tpu_custom_call.1} parent=1 // pred_check_branch
      %22 = sbr.rel (0) target = $region9
    $region8: #{tpu_custom_call.1} parent=1 // pred_region
      %23 = dma.done [#allocation4], 128
    $region9: #{tpu_custom_call.1} parent=1 // pred_fallthru
      _
    %s24 = sadd.s32 0, 0
    %p25 = scmp.eq.s32.totalorder 0, 0
    // Predicated region
    $region10: #{tpu_custom_call.1} parent=1 // pred_check
      %p26 = pneg %p25
    $region11: #{tpu_custom_call.1} parent=1 // pred_check_branch
      %28 = sbr.rel (%p26) target = $region13
    $region12: #{tpu_custom_call.1} parent=1 // pred_region
      %vm29 = vcmask 57344
      %30 = vst.msk [vmem:[#allocation2] sm:$0x1] %vm29, 0.0
    $region13: #{tpu_custom_call.1} parent=1 // pred_fallthru
      _
    %v31 = vld [vmem:[#allocation3] sm:$0xff]
    %v32 = vmul.f32 %v31, -2.0
    %vm33 = vcmask 64512
    %v34 = vsel %vm33, %v32, -inf
    %v35 = vrot.slane %v34, 4
    %v36 = vmax.f32 %v34, %v35
    %v37 = vrot.slane %v36, 2
    %v38 = vmax.f32 %v36, %v37
    %v39 = vrot.slane %v38, 1
    %v40 = vmax.f32 %v38, %v39
    %v41 = vsub.f32 %v32, %v40
    %v42 = vmul.f32 %v41, 1.442695
    %v43 = vpow.pop %v42
    %v44 = vsel %vm33, %v43, 0.0
    %v45 = vrot.slane %v44, 4
    %v46 = vadd.f32 %v44, %v45
    %v47 = vrot.slane %v46, 2
    %v48 = vadd.f32 %v46, %v47
    %v49 = vrot.slane %v48, 1
    %v50 = vadd.f32 %v48, %v49
    %v51 = vlog2.pop %v50
    %v52 = vmul.f32 %v51, 0.6931472
    %v53 = vadd.f32 %v40, %v52
    %v54 = vsub.f32 %v53, %v32
    %s55 = sadd.s32 0, 0
    %s56 = smul.u32 %s55, 8
    %v57 = vlaneseq
    %v58 = vand.u32 %v57, 127
    %v59 = vstv %s56
    %v60 = vadd.s32 %v59, %v58
    %vm61 = vcmp.lt.s32.totalorder %v60, 8
    %v62 = vsel %vm61, %v54, 0.0
    %v63 = vld [vmem:[#allocation2] sm:$0x1]
    %v64 = vadd.f32 %v63, %v62
    %vm65 = vcmask 57344
    %66 = vst.msk [vmem:[#allocation2] sm:$0x1] %vm65, %v64
    // Predicated region
    $region14: #{tpu_custom_call.1} parent=1 // pred_check
      %p67 = pneg %p25
    $region15: #{tpu_custom_call.1} parent=1 // pred_check_branch
      %69 = sbr.rel (%p67) target = $region17
    $region16: #{tpu_custom_call.1} parent=1 // pred_region
      %v70 = vld [vmem:[#allocation2] sm:$0x1]
      %v71 = vsel %vm65, %v70, 0.0
      %72 = vadd.xlane.f32.xlu0 %v71
      %v73 = vpop.xlane.xlu0 %72
      %v74 = vrot.slane %v73, 4
      %v75 = vadd.f32 %v73, %v74
      %v76 = vrot.slane %v75, 2
      %v77 = vadd.f32 %v75, %v76
      %v78 = vrot.slane %v77, 1
      %v79 = vadd.f32 %v77, %v78
      %s80 = vtos %v79
      %s81 = scalar_lea.smem [#allocation6], 0
      %82 = sst [smem:[%s81]] %s80
    $region17: #{tpu_custom_call.1} parent=1 // pred_fallthru
      _
    // Predicated region
    $region18: #{tpu_custom_call.1} parent=1 // pred_check
      _
    $region19: #{tpu_custom_call.1} parent=1 // pred_check_branch
      %84 = sbr.rel (0) target = $region21
    $region20: #{tpu_custom_call.1} parent=1 // pred_region
      %s86 = ssub.s32 16, 16
      %87 = vsyncadd [#allocation5], %s86
      %90 = dma.smem_to_hbm [#allocation6], 16, %s1, [#allocation5]
    $region21: #{tpu_custom_call.1} parent=1 // pred_fallthru
      _
    // Predicated region
    $region22: #{tpu_custom_call.1} parent=1 // pred_check
      _
    $region23: #{tpu_custom_call.1} parent=1 // pred_check_branch
      %92 = sbr.rel (0) target = $region25
    $region24: #{tpu_custom_call.1} parent=1 // pred_region
      %93 = dma.done [#allocation5], 16
    $region25: #{tpu_custom_call.1} parent=1 // pred_fallthru
      _
    %94 = sfence
    %95 = vsyncpa [#allocation4], 1
    %96 = vsyncpa [#allocation5], 1

</llo_original>
